<compile_context>
chip_gen: v5e
topology: v5e:2x2
jax: 0.10.0
libtpu: 0.0.40
codegen_flags: <defaults>
</compile_context>

<pallas_src>
import functools

import jax
import jax.numpy as jnp
from jax.experimental import pallas as pl
from jax.experimental.pallas import tpu as pltpu


def pointer_kernel(enc_ref, dec_ref, w1_ref, v_ref, out_ref, *, batch_tile,
                   seq_len):
    # enc_ref: (E, TB*S) bf16  encoder features, batches concatenated on lanes
    # dec_ref: (D, TB*S) f32   decoder projection + fused biases, pre-broadcast
    # w1_ref:  (D, E)    bf16
    # v_ref:   (D, 1)    f32
    # out_ref: (1, 1, TB*S)    attention weights, lane-dense
    cols = batch_tile * seq_len

    # One wide MXU matmul for every (batch, seq) column: bf16 in, f32 accumulate.
    h = jnp.dot(w1_ref[...], enc_ref[...],
                preferred_element_type=jnp.float32)          # [D, TB*S]
    h = jnp.tanh(h + dec_ref[...])                           # f32 VPU/EUP math

    # v-projection as VPU multiply + sublane (XLU) reduce -> lane-dense scores.
    scores = jnp.sum(h * v_ref[...], axis=0, keepdims=True)  # [1, TB*S]

    # Per-batch softmax over its group of `seq_len` lanes, done with lane masks
    # (full-width vreg ops only: no relayouts, reshapes or narrow stores).
    lane = jax.lax.broadcasted_iota(jnp.int32, (1, cols), 1)
    out = jnp.zeros_like(scores)
    for b in range(batch_tile):                               # static unroll
        mask = (lane >= b * seq_len) & (lane < (b + 1) * seq_len)
        sc_b = jnp.where(mask, scores, -1e30)
        m = jnp.max(sc_b, axis=-1, keepdims=True)             # [1, 1]
        e = jnp.exp(sc_b - m)                                 # masked lanes -> 0
        s = jnp.sum(e, axis=-1, keepdims=True)                # [1, 1]
        out = out + e * pl.reciprocal(s, approx=True)         # EUP reciprocal

    out_ref[0] = out.astype(out_ref.dtype)                    # single wide store


def _pick_batch_tile(batch, seq_len, max_cols=512):
    """Number of batches folded into one grid step (columns live on lanes)."""
    if batch * seq_len <= max_cols:
        return batch                       # everything in a single grid step
    for tb in range(batch - 1, 0, -1):     # largest legal divisor first
        if batch % tb == 0 and tb * seq_len <= max_cols and (tb * seq_len) % 128 == 0:
            return tb
    # Fall back to full-extent blocks (always legal).  For very long sequences
    # (v7x 64 MiB VMEM) one would instead tile S with an online softmax.
    return batch


def pointer_forward(encoder_outputs, decoder_state, w1, b1, w2, b2, v,
                    *, matmul_dtype=jnp.bfloat16):
    """encoder_outputs: [B, S, E], decoder_state: [B, 1, D].

    w1: [D, E], b1: [D], w2: [D, D], b2: [D], v: [1, D]  (PyTorch Linear layout).
    Returns attention weights [B, S, 1] (softmax over S).
    """
    B, S, E = encoder_outputs.shape
    D = w1.shape[0]

    tb = _pick_batch_tile(B, S)
    num_tiles = B // tb
    cols = tb * S

    # Hoisted decoder projection, with both Linear biases fused into it:
    #   dec_proj[b, d] = (decoder_state[b] @ W2^T)[d] + b1[d] + b2[d]
    dec_proj = decoder_state.reshape(B, D) @ w2.T + (b1 + b2)        # [B, D] f32
    # Broadcast each batch's decoder term across its S lane-columns.
    dec_wide = jnp.repeat(dec_proj, S, axis=0).T                     # [D, B*S]
    dec_wide = dec_wide.astype(jnp.float32)

    # Encoder features with (batch, seq) flattened onto the lane axis.
    enc_wide = jnp.transpose(encoder_outputs, (2, 0, 1)).reshape(E, B * S)
    enc_wide = enc_wide.astype(matmul_dtype)                         # bf16 MXU
    w1_m = w1.astype(matmul_dtype)                                   # [D, E]
    v_col = v.reshape(D, 1).astype(jnp.float32)                      # [D, 1]

    grid_spec = pltpu.PrefetchScalarGridSpec(
        num_scalar_prefetch=0,
        grid=(num_tiles,),
        in_specs=[
            pl.BlockSpec((E, cols), lambda i: (0, i)),   # encoder columns
            pl.BlockSpec((D, cols), lambda i: (0, i)),   # decoder term columns
            pl.BlockSpec((D, E), lambda i: (0, 0)),      # W1 (resident)
            pl.BlockSpec((D, 1), lambda i: (0, 0)),      # v  (resident)
        ],
        out_specs=pl.BlockSpec((1, 1, cols), lambda i: (i, 0, 0)),
    )

    out = pl.pallas_call(
        functools.partial(pointer_kernel, batch_tile=tb, seq_len=S),
        out_shape=jax.ShapeDtypeStruct((num_tiles, 1, cols),
                                       encoder_outputs.dtype),
        grid_spec=grid_spec,
        compiler_params=pltpu.CompilerParams(
            dimension_semantics=("parallel",)),
    )(enc_wide, dec_wide, w1_m, v_col)

    # (num_tiles, 1, tb*S) is already in (batch, seq) row-major order.
    return out.reshape(B, S, 1)


def pointer_reference(encoder_outputs, decoder_state, w1, b1, w2, b2, v):
    h = jnp.tanh(encoder_outputs @ w1.T + b1 + decoder_state @ w2.T + b2)
    scores = h @ v.T                                          # [B, S, 1]
    return jax.nn.softmax(scores, axis=1)


if __name__ == "__main__":
    B, S = 2, 8
    enc_hidden, dec_hidden = 32, 32

    key = jax.random.PRNGKey(0)
    k_enc, k_dec, k_w1, k_b1, k_w2, k_b2, k_v = jax.random.split(key, 7)

    encoder_outputs = jax.random.normal(k_enc, (B, S, enc_hidden), jnp.float32)
    decoder_state = jax.random.normal(k_dec, (B, 1, dec_hidden), jnp.float32)

    # Deterministic synthetic parameters (nn.Linear shapes: [out, in]).
    w1 = jax.random.normal(k_w1, (dec_hidden, enc_hidden), jnp.float32) * 0.1
    b1 = jax.random.normal(k_b1, (dec_hidden,), jnp.float32) * 0.1
    w2 = jax.random.normal(k_w2, (dec_hidden, dec_hidden), jnp.float32) * 0.1
    b2 = jax.random.normal(k_b2, (dec_hidden,), jnp.float32) * 0.1
    v = jax.random.normal(k_v, (1, dec_hidden), jnp.float32) * 0.1

    out = pointer_forward(encoder_outputs, decoder_state, w1, b1, w2, b2, v)
    out = jax.block_until_ready(out)

    ref = pointer_reference(encoder_outputs, decoder_state, w1, b1, w2, b2, v)
    assert out.shape == (B, S, 1)
    # Each per-batch softmax must sum to ~1 (approx reciprocal tolerance).
    assert bool(jnp.allclose(jnp.sum(out, axis=1), 1.0, atol=1e-2))
    # bf16 MXU operands + EUP approximate reciprocal -> bf16-level tolerance.
    assert bool(jnp.allclose(out, ref, atol=2e-2, rtol=2e-2))

    print("KERNEL_OK")
</pallas_src>

<mosaic_0001>
module attributes {stable_mosaic.version = 11 : i64} {
  func.func @pointer_kernel(%arg0: i32, %arg1: memref<32x16xbf16, #tpu.memory_space<vmem>>, %arg2: memref<32x16xf32, #tpu.memory_space<vmem>>, %arg3: memref<32x32xbf16, #tpu.memory_space<vmem>>, %arg4: memref<32x1xf32, #tpu.memory_space<vmem>>, %arg5: memref<1x1x16xf32, #tpu.memory_space<vmem>>) attributes {dimension_semantics = [#tpu.dimension_semantics<parallel>], iteration_bounds = array<i64: 1>, scalar_prefetch = 0 : i64, scratch_operands = 0 : i64, tpu.core_type = #tpu.core_type<tc>, window_params = [{transform_indices = @transform_0, window_bounds = array<i64: 32, 16>}, {transform_indices = @transform_1, window_bounds = array<i64: 32, 16>}, {pipeline_mode = #tpu.pipeline_mode<synchronous>, transform_indices = @transform_2, window_bounds = array<i64: 32, 32>}, {pipeline_mode = #tpu.pipeline_mode<synchronous>, transform_indices = @transform_3, window_bounds = array<i64: 32, 1>}, {transform_indices = @transform_4, window_bounds = array<i64: 1, 1, 16>}]} {
    %c0 = arith.constant 0 : index
    %c0_0 = arith.constant 0 : index
    %0 = vector.load %arg3[%c0, %c0_0] : memref<32x32xbf16, #tpu.memory_space<vmem>>, vector<32x32xbf16>
    %c0_1 = arith.constant 0 : index
    %c0_2 = arith.constant 0 : index
    %1 = vector.load %arg1[%c0_1, %c0_2] : memref<32x16xbf16, #tpu.memory_space<vmem>>, vector<32x16xbf16>
    %cst = arith.constant dense<0.000000e+00> : vector<32x16xf32>
    %2 = tpu.matmul %0, %1, %cst {dimension_numbers = #tpu.dot_dimension_numbers<[1], [0], [0], [1], [0, 0, 1, 1], [], []>} : vector<32x32xbf16>, vector<32x16xbf16>, vector<32x16xf32> -> vector<32x16xf32>
    %c0_3 = arith.constant 0 : index
    %c0_4 = arith.constant 0 : index
    %3 = vector.load %arg2[%c0_3, %c0_4] : memref<32x16xf32, #tpu.memory_space<vmem>>, vector<32x16xf32>
    %4 = arith.addf %2, %3 : vector<32x16xf32>
    %5 = math.tanh %4 : vector<32x16xf32>
    %c0_5 = arith.constant 0 : index
    %c0_6 = arith.constant 0 : index
    %6 = vector.load %arg4[%c0_5, %c0_6] : memref<32x1xf32, #tpu.memory_space<vmem>>, vector<32x1xf32>
    %7 = vector.broadcast %6 : vector<32x1xf32> to vector<32x16xf32>
    %8 = arith.mulf %5, %7 : vector<32x16xf32>
    %cst_7 = arith.constant dense<0.000000e+00> : vector<16xf32>
    %9 = vector.multi_reduction <add>, %8, %cst_7 [0] : vector<32x16xf32> to vector<16xf32>
    %10 = vector.shape_cast %9 : vector<16xf32> to vector<1x16xf32>
    %11 = tpu.iota {dimensions = array<i32: 1>} : vector<1x16xi32>
    %cst_8 = arith.constant 0.000000e+00 : f32
    %12 = vector.broadcast %cst_8 : f32 to vector<1x16xf32>
    %c0_i32 = arith.constant 0 : i32
    %13 = vector.broadcast %c0_i32 : i32 to vector<1x16xi32>
    %14 = arith.cmpi sge, %11, %13 : vector<1x16xi32>
    %c8_i32 = arith.constant 8 : i32
    %15 = vector.broadcast %c8_i32 : i32 to vector<1x16xi32>
    %16 = arith.cmpi slt, %11, %15 : vector<1x16xi32>
    %17 = arith.andi %14, %16 : vector<1x16xi1>
    %cst_9 = arith.constant -1.000000e+30 : f32
    %18 = vector.broadcast %cst_9 : f32 to vector<1x16xf32>
    %19 = arith.select %17, %10, %18 : vector<1x16xi1>, vector<1x16xf32>
    %cst_10 = arith.constant dense<0xFF800000> : vector<1xf32>
    %20 = vector.multi_reduction <maximumf>, %19, %cst_10 [1] : vector<1x16xf32> to vector<1xf32>
    %21 = vector.shape_cast %20 : vector<1xf32> to vector<1x1xf32>
    %22 = vector.broadcast %21 : vector<1x1xf32> to vector<1x16xf32>
    %23 = arith.subf %19, %22 : vector<1x16xf32>
    %24 = math.exp %23 : vector<1x16xf32>
    %cst_11 = arith.constant dense<0.000000e+00> : vector<1xf32>
    %25 = vector.multi_reduction <add>, %24, %cst_11 [1] : vector<1x16xf32> to vector<1xf32>
    %26 = vector.shape_cast %25 : vector<1xf32> to vector<1x1xf32>
    %27 = tpu.reciprocal %26 {approx = true} : vector<1x1xf32> -> vector<1x1xf32>
    %28 = vector.broadcast %27 : vector<1x1xf32> to vector<1x16xf32>
    %29 = arith.mulf %24, %28 : vector<1x16xf32>
    %30 = arith.addf %12, %29 : vector<1x16xf32>
    %c8_i32_12 = arith.constant 8 : i32
    %31 = vector.broadcast %c8_i32_12 : i32 to vector<1x16xi32>
    %32 = arith.cmpi sge, %11, %31 : vector<1x16xi32>
    %c16_i32 = arith.constant 16 : i32
    %33 = vector.broadcast %c16_i32 : i32 to vector<1x16xi32>
    %34 = arith.cmpi slt, %11, %33 : vector<1x16xi32>
    %35 = arith.andi %32, %34 : vector<1x16xi1>
    %cst_13 = arith.constant -1.000000e+30 : f32
    %36 = vector.broadcast %cst_13 : f32 to vector<1x16xf32>
    %37 = arith.select %35, %10, %36 : vector<1x16xi1>, vector<1x16xf32>
    %cst_14 = arith.constant dense<0xFF800000> : vector<1xf32>
    %38 = vector.multi_reduction <maximumf>, %37, %cst_14 [1] : vector<1x16xf32> to vector<1xf32>
    %39 = vector.shape_cast %38 : vector<1xf32> to vector<1x1xf32>
    %40 = vector.broadcast %39 : vector<1x1xf32> to vector<1x16xf32>
    %41 = arith.subf %37, %40 : vector<1x16xf32>
    %42 = math.exp %41 : vector<1x16xf32>
    %cst_15 = arith.constant dense<0.000000e+00> : vector<1xf32>
    %43 = vector.multi_reduction <add>, %42, %cst_15 [1] : vector<1x16xf32> to vector<1xf32>
    %44 = vector.shape_cast %43 : vector<1xf32> to vector<1x1xf32>
    %45 = tpu.reciprocal %44 {approx = true} : vector<1x1xf32> -> vector<1x1xf32>
    %46 = vector.broadcast %45 : vector<1x1xf32> to vector<1x16xf32>
    %47 = arith.mulf %42, %46 : vector<1x16xf32>
    %48 = arith.addf %30, %47 : vector<1x16xf32>
    %c0_16 = arith.constant 0 : index
    %c0_17 = arith.constant 0 : index
    %c0_18 = arith.constant 0 : index
    %49 = vector.load %arg5[%c0_16, %c0_17, %c0_18] : memref<1x1x16xf32, #tpu.memory_space<vmem>>, vector<1x1x16xf32>
    %50 = vector.shape_cast %49 : vector<1x1x16xf32> to vector<1x16xf32>
    %51 = vector.shape_cast %48 : vector<1x16xf32> to vector<1x1x16xf32>
    tpu.vector_store %arg5[%c0_16, %c0_17, %c0_18], %51 {strides = array<i32>} : memref<1x1x16xf32, #tpu.memory_space<vmem>>, vector<1x1x16xf32>,
    return
  }
  func.func @transform_0(%arg0: i32) -> (i32, i32) {
    %c0_i32 = arith.constant 0 : i32
    %c0_i32_0 = arith.constant 0 : i32
    return %c0_i32, %arg0 : i32, i32
  }
  func.func @transform_1(%arg0: i32) -> (i32, i32) {
    %c0_i32 = arith.constant 0 : i32
    %c0_i32_0 = arith.constant 0 : i32
    return %c0_i32, %arg0 : i32, i32
  }
  func.func @transform_2(%arg0: i32) -> (i32, i32) {
    %c0_i32 = arith.constant 0 : i32
    %c0_i32_0 = arith.constant 0 : i32
    %c0_i32_1 = arith.constant 0 : i32
    return %c0_i32, %c0_i32_0 : i32, i32
  }
  func.func @transform_3(%arg0: i32) -> (i32, i32) {
    %c0_i32 = arith.constant 0 : i32
    %c0_i32_0 = arith.constant 0 : i32
    %c0_i32_1 = arith.constant 0 : i32
    return %c0_i32, %c0_i32_0 : i32, i32
  }
  func.func @transform_4(%arg0: i32) -> (i32, i32, i32) {
    %c0_i32 = arith.constant 0 : i32
    %c0_i32_0 = arith.constant 0 : i32
    %c0_i32_1 = arith.constant 0 : i32
    return %arg0, %c0_i32, %c0_i32_0 : i32, i32, i32
  }
}

</mosaic_0001>

<llo_original>
// kernel: tpu_custom_call.1
$region0: #{tpu_custom_call.1}
  #allocation0 [shape = 'u32[]', space=smem, size = 0x4, offset = 0x4, fixed_abs, tag = 'smem constant byte address 0x4 - core index']
  #allocation1 [shape = 'u32[72,128]{1,0:T(1,128)}', space=vmem, size = 0x9000, scoped, tag = 'internal scratch']
  %s0 = inlined_call_operand.vmem [shape: bf16[32,16], index: 0, kind: input, shape index: {}]
  %s1 = inlined_call_operand.vmem [shape: f32[32,16], index: 1, kind: input, shape index: {}]
  %s2 = inlined_call_operand.vmem [shape: bf16[32,32], index: 2, kind: input, shape index: {}]
  %s3 = inlined_call_operand.vmem [shape: f32[32,1], index: 3, kind: input, shape index: {}]
  %s4 = inlined_call_operand.hbm [shape: f32[1,1,16], index: 4, kind: output, shape index: {}]
  %s5 = sld [smem:[#allocation0]]
  $region26: #{tpu_custom_call.1} parent=0
    _
  %s7 = ssub.s32 1, %s5
  %s8 = scalar_select 0, %s7, %s5
  $region1: #{tpu_custom_call.1} parent=0
    #allocation2 [shape = 'u8[512]{0}', space=vmem, size = 0x400, scoped, tag = 'output window, operand 0, single buffered']
    #allocation3 [shape = 's32[1]{0}', space=sflag, size = 0x4, scoped, tag = 'scoped memory for tpu_custom_call.1']
    %9 = vsyncpa [#allocation3], 0
    // Predicated region
    $region2: #{tpu_custom_call.1} parent=1 // pred_check
      _
    $region3: #{tpu_custom_call.1} parent=1 // pred_check_branch
      %11 = sbr.rel (0) target = $region5
    $region4: #{tpu_custom_call.1} parent=1 // pred_region
      _
    $region5: #{tpu_custom_call.1} parent=1 // pred_fallthru
      _
    // Predicated region
    $region6: #{tpu_custom_call.1} parent=1 // pred_check
      _
    $region7: #{tpu_custom_call.1} parent=1 // pred_check_branch
      %13 = sbr.rel (0) target = $region9
    $region8: #{tpu_custom_call.1} parent=1 // pred_region
      _
    $region9: #{tpu_custom_call.1} parent=1 // pred_fallthru
      _
    // Predicated region
    $region10: #{tpu_custom_call.1} parent=1 // pred_check
      _
    $region11: #{tpu_custom_call.1} parent=1 // pred_check_branch
      %15 = sbr.rel (0) target = $region13
    $region12: #{tpu_custom_call.1} parent=1 // pred_region
      _
    $region13: #{tpu_custom_call.1} parent=1 // pred_fallthru
      _
    // Predicated region
    $region14: #{tpu_custom_call.1} parent=1 // pred_check
      _
    $region15: #{tpu_custom_call.1} parent=1 // pred_check_branch
      %17 = sbr.rel (0) target = $region17
    $region16: #{tpu_custom_call.1} parent=1 // pred_region
      _
    $region17: #{tpu_custom_call.1} parent=1 // pred_fallthru
      _
    %v19 = vld [vmem:[%s2] sm:$0xf]
    %v20 = vld [vmem:[%s2 + $0x4] sm:$0xf]
    %v21 = vld [vmem:[%s2 + $0x8] sm:$0xf]
    %v22 = vld [vmem:[%s2 + $0xc] sm:$0xf]
    %v23 = vld [vmem:[%s0] sm:$0xf]
    %v24 = vld [vmem:[%s0 + $0x4] sm:$0xf]
    %v25 = vld [vmem:[%s0 + $0x8] sm:$0xf]
    %v26 = vld [vmem:[%s0 + $0xc] sm:$0xf]
    %v27 = vld [vmem:[%s1] sm:$0xff]
    %v28 = vld [vmem:[%s1 + $0x8] sm:$0xff]
    %v29 = vld [vmem:[%s1 + $0x10] sm:$0xff]
    %v30 = vld [vmem:[%s1 + $0x18] sm:$0xff]
    %v35 = vunpack.c.l.b16 %v19
    %v36 = vunpack.c.l.b16 %v20
    %v37 = vunpack.c.l.b16 %v21
    %v38 = vunpack.c.l.b16 %v22
    %v39 = vpack.c.b16 %v36, %v35
    %v40 = vpack.c.b16 %v38, %v37
    %v45 = vunpack.c.l.b16 %v23
    %v46 = vunpack.c.l.b16 %v24
    %v47 = vunpack.c.l.b16 %v25
    %v48 = vunpack.c.l.b16 %v26
    %v49 = vpack.c.b16 %v46, %v45
    %v50 = vpack.c.b16 %v48, %v47
    %vm53 = vcmask 261120
    %v55 = vsel %vm53, %v39, 0
    %v58 = vsel %vm53, %v40, 0
    %60 = vmatpush.bf16.msra.mxu0 0
    %61 = vmatpush.bf16.msra.mxu0 0
    %62 = vmatpush.bf16.msra.mxu0 0
    %63 = vmatpush.bf16.msra.mxu0 0
    %64 = vmatpush.bf16.msra.mxu0 0
    %65 = vmatpush.bf16.msra.mxu0 0
    %66 = vmatpush.bf16.msra.mxu0 %v50
    %67 = vmatpush.bf16.msra.mxu0 %v49
    %68 = vmatmul.bf16.gmra.mxu0 %v55
    %v69 = vpop.f32.mrf.mxu0
    %v70 = vadd.f32 %v27, %v69
    %v71 = vpop.f32.mrf.mxu0
    %v72 = vadd.f32 %v28, %v71
    %73 = vmatmul.bf16.gmra.mxu0 %v58
    %v74 = vpop.f32.mrf.mxu0
    %v75 = vadd.f32 %v29, %v74
    %v76 = vpop.f32.mrf.mxu0
    %v77 = vadd.f32 %v30, %v76
    %78 = vdwg.mxu0
    %v79 = vtanh.pop %v70
    %v80 = vtanh.pop %v72
    %v81 = vtanh.pop %v75
    %v82 = vtanh.pop %v77
    %v83 = vld [vmem:[%s3] sm:$0xff]
    %v84 = vld [vmem:[%s3 + $0x8] sm:$0xff]
    %v85 = vld [vmem:[%s3 + $0x10] sm:$0xff]
    %v86 = vld [vmem:[%s3 + $0x18] sm:$0xff]
    %88 = vset.pattern.permute.xlu0 0
    %89 = vperm.xlu0 %88, %v83
    %v90 = vpop.permute.xlu0 %89
    %93 = vset.pattern.permute.xlu0 0
    %94 = vperm.xlu0 %93, %v84
    %v95 = vpop.permute.xlu0 %94
    %98 = vset.pattern.permute.xlu0 0
    %99 = vperm.xlu0 %98, %v85
    %v100 = vpop.permute.xlu0 %99
    %103 = vset.pattern.permute.xlu0 0
    %104 = vperm.xlu0 %103, %v86
    %v105 = vpop.permute.xlu0 %104
    %v107 = vmul.f32 %v79, %v90
    %v108 = vmul.f32 %v80, %v95
    %v109 = vmul.f32 %v81, %v100
    %v110 = vmul.f32 %v82, %v105
    %vm111 = vcmask 130048
    %v112 = vsel %vm111, %v107, 0.0
    %v113 = vsel %vm111, %v108, 0.0
    %v114 = vadd.f32 %v112, %v113
    %v115 = vsel %vm111, %v109, 0.0
    %v116 = vadd.f32 %v114, %v115
    %v117 = vsel %vm111, %v110, 0.0
    %v118 = vadd.f32 %v116, %v117
    %v119 = vrot.slane %v118, 4
    %v120 = vadd.f32 %v118, %v119
    %v121 = vrot.slane %v120, 2
    %v122 = vadd.f32 %v120, %v121
    %v123 = vrot.slane %v122, 1
    %v124 = vadd.f32 %v122, %v123
    %v125 = vlaneseq
    %v126 = vand.u32 %v125, 127
    %vm127 = vcmp.ge.s32.totalorder %v126, 0
    %vm128 = vcmp.lt.s32.totalorder %v126, 8
    %vm129 = vmand %vm127, %vm128
    %v130 = vsel %vm129, %v124, -1e+30
    %v131 = vsel %vm111, %v130, -inf
    %132 = vmax.xlane.f32.xlu0 %v131
    %v133 = vpop.xlane.xlu0 %132
    %v134 = vsub.f32 %v130, %v133
    %v135 = vmul.f32 %v134, 1.442695
    %v136 = vpow.pop %v135
    %v137 = vsel %vm111, %v136, 0.0
    %138 = vadd.xlane.f32.xlu0 %v137
    %v139 = vpop.xlane.xlu0 %138
    %v140 = vrcp.pop %v139
    %v141 = vmul.f32 %v136, %v140
    %v142 = vadd.f32 %v141, 0.0
    %vm143 = vcmp.ge.s32.totalorder %v126, 8
    %vm144 = vcmp.lt.s32.totalorder %v126, 16
    %vm145 = vmand %vm143, %vm144
    %v146 = vsel %vm145, %v124, -1e+30
    %v147 = vsel %vm111, %v146, -inf
    %148 = vmax.xlane.f32.xlu0 %v147
    %v149 = vpop.xlane.xlu0 %148
    %v150 = vsub.f32 %v146, %v149
    %v151 = vmul.f32 %v150, 1.442695
    %v152 = vpow.pop %v151
    %v153 = vsel %vm111, %v152, 0.0
    %154 = vadd.xlane.f32.xlu0 %v153
    %v155 = vpop.xlane.xlu0 %154
    %v156 = vrcp.pop %v155
    %v157 = vmul.f32 %v152, %v156
    %v158 = vadd.f32 %v142, %v157
    %vm159 = vcmask 122880
    %160 = vst.msk [vmem:[#allocation2] sm:$0x1] %vm159, %v158
    // Predicated region
    $region18: #{tpu_custom_call.1} parent=1 // pred_check
      _
    $region19: #{tpu_custom_call.1} parent=1 // pred_check_branch
      %162 = sbr.rel (0) target = $region21
    $region20: #{tpu_custom_call.1} parent=1 // pred_region
      %164 = vsyncadd [#allocation3], 0
      %s166 = sshll.u32 [#allocation2], 4
      %s167 = int_to_ptr.vmem [resolvable:$true] %s166
      %s168 = sshll.u32 %s4, 4
      %s169 = int_to_ptr.hbm [resolvable:$true] %s168
      %171 = dma.vmem_to_hbm [thread:$0]  %s167, 16, %s169, [#allocation3]
    $region21: #{tpu_custom_call.1} parent=1 // pred_fallthru
      _
    // Predicated region
    $region22: #{tpu_custom_call.1} parent=1 // pred_check
      _
    $region23: #{tpu_custom_call.1} parent=1 // pred_check_branch
      %173 = sbr.rel (0) target = $region25
    $region24: #{tpu_custom_call.1} parent=1 // pred_region
      %175 = dma.done [#allocation3], 16
    $region25: #{tpu_custom_call.1} parent=1 // pred_fallthru
      _
    %176 = vsyncpa [#allocation3], 1

</llo_original>
